<compile_context>
chip_gen: v6e
topology: v6e:2x2x1
jax: 0.10.0
libtpu: 0.0.40
codegen_flags: <defaults>
</compile_context>

<pallas_src>
import jax
import jax.numpy as jnp
from jax.experimental import pallas as pl
from jax.experimental.pallas import tpu as pltpu


_VMEM_SPEC = pl.BlockSpec(memory_space=pltpu.MemorySpace.VMEM)


# --------------------------- 'Linear' branch kernel -------------------------
def tim_linear_kernel(x_ref, w_ref, o_ref):
    # x_ref: (B, T) float32 time differences
    # w_ref: (1, E) float32  == torch Linear(1, E, bias=False).weight.T
    # o_ref: (B, T, E) float32
    logx = jnp.log(x_ref[...] + 1e-10)                      # (B, T)
    o_ref[...] = logx[:, :, None] * w_ref[...][None, :, :]  # (B, T, E)


def tim_diff_emb_linear(x, w_t):
    B, T = x.shape
    E = w_t.shape[-1]
    return pl.pallas_call(
        tim_linear_kernel,
        out_shape=jax.ShapeDtypeStruct((B, T, E), jnp.float32),
        in_specs=[_VMEM_SPEC, _VMEM_SPEC],
        out_specs=_VMEM_SPEC,
    )(x, w_t)


# --------------------------- Embedding branch kernel ------------------------
def tim_embed_kernel(idx_ref, table_ref, o_ref):
    # idx_ref:   (B, T) int32 time-bucket ids
    # table_ref: (V, E) float32 embedding table (row 0 is the padding row)
    # o_ref:     (B, T, E) float32
    B, T = idx_ref.shape
    V, E = table_ref.shape
    idx = idx_ref[...]                                            # (B, T)
    iota = jax.lax.broadcasted_iota(jnp.int32, (B, T, V), 2)      # (B, T, V)
    onehot = (iota == idx[:, :, None]).astype(jnp.float32)        # (B, T, V)
    # Single wide MXU matmul performs the whole gather.
    out = jnp.dot(onehot.reshape(B * T, V), table_ref[...],
                  preferred_element_type=jnp.float32)             # (B*T, E)
    o_ref[...] = out.reshape(B, T, E)


def tim_diff_emb_embedding(ids, table):
    B, T = ids.shape
    E = table.shape[-1]
    return pl.pallas_call(
        tim_embed_kernel,
        out_shape=jax.ShapeDtypeStruct((B, T, E), jnp.float32),
        in_specs=[_VMEM_SPEC, _VMEM_SPEC],
        out_specs=_VMEM_SPEC,
    )(ids, table)


# --------------------------- module-level wrapper ---------------------------
def tim_diff_emb_forward(x, params, tim_emb_type):
    """Mirrors TIM_DIFF_EMB.forward.

    tim_emb_type == 'Linear' : x is (B, T) float, returns (B, T, E).
    otherwise                : x is (B, T) int,   returns (B, T, E).
    """
    if tim_emb_type == "Linear":
        return tim_diff_emb_linear(x.astype(jnp.float32), params["w_t"])
    return tim_diff_emb_embedding(x.astype(jnp.int32), params["table"])


# --------------------------- pure-JAX references ----------------------------
def linear_reference(x, w_t):
    return jnp.log(x[..., None] + 1e-10) * w_t[None, :, :].reshape(1, 1, -1)


def embedding_reference(ids, table):
    return table[ids]


# --------------------------- deterministic params ---------------------------
def make_params(key, tim_size, tim_emb_size):
    k_lin, k_emb = jax.random.split(key)
    # torch Linear(1, E, bias=False): weight (E, 1), uniform(-1, 1) since fan_in = 1.
    w = jax.random.uniform(k_lin, (tim_emb_size, 1), jnp.float32, -1.0, 1.0)
    # torch Embedding(V, E, padding_idx=0): N(0,1) rows, padding row zeroed.
    table = jax.random.normal(k_emb, (tim_size, tim_emb_size), jnp.float32)
    table = table.at[0].set(0.0)
    return {"w_t": w.T, "table": table}  # w_t: (1, E)


if __name__ == "__main__":
    # Small, module-consistent shapes.
    B, T = 2, 8
    tim_size, tim_emb_size = 48, 16

    key = jax.random.PRNGKey(0)
    k_p, k_xf, k_xi = jax.random.split(key, 3)
    params = make_params(k_p, tim_size, tim_emb_size)

    # 'Linear' branch: positive time differences.
    x_float = jax.random.uniform(k_xf, (B, T), jnp.float32, 0.1, 100.0)
    y_lin = jax.block_until_ready(tim_diff_emb_forward(x_float, params, "Linear"))
    y_lin_ref = linear_reference(x_float, params["w_t"])
    assert y_lin.shape == (B, T, tim_emb_size)
    assert jnp.allclose(y_lin, y_lin_ref, rtol=1e-5, atol=1e-5)

    # Embedding branch: integer time-bucket ids (0 is the padding id).
    x_ids = jax.random.randint(k_xi, (B, T), 0, tim_size, jnp.int32)
    y_emb = jax.block_until_ready(tim_diff_emb_forward(x_ids, params, "Embedding"))
    y_emb_ref = embedding_reference(x_ids, params["table"])
    assert y_emb.shape == (B, T, tim_emb_size)
    assert jnp.allclose(y_emb, y_emb_ref, rtol=1e-5, atol=1e-5)

    print("KERNEL_OK")
</pallas_src>

<mosaic_0001>
module attributes {stable_mosaic.version = 11 : i64} {
  func.func @tim_linear_kernel(%arg0: memref<2x8xf32, #tpu.memory_space<vmem>>, %arg1: memref<1x16xf32, #tpu.memory_space<vmem>>, %arg2: memref<2x8x16xf32, #tpu.memory_space<vmem>>) attributes {dimension_semantics = [], scalar_prefetch = 0 : i64, scratch_operands = 0 : i64, tpu.core_type = #tpu.core_type<tc>} {
    %c0 = arith.constant 0 : index
    %c0_0 = arith.constant 0 : index
    %0 = vector.load %arg0[%c0, %c0_0] : memref<2x8xf32, #tpu.memory_space<vmem>>, vector<2x8xf32>
    %cst = arith.constant 1.000000e-10 : f32
    %1 = vector.broadcast %cst : f32 to vector<2x8xf32>
    %2 = arith.addf %0, %1 : vector<2x8xf32>
    %3 = math.log %2 : vector<2x8xf32>
    %4 = vector.shape_cast %3 : vector<2x8xf32> to vector<2x8x1xf32>
    %c0_1 = arith.constant 0 : index
    %c0_2 = arith.constant 0 : index
    %5 = vector.load %arg1[%c0_1, %c0_2] : memref<1x16xf32, #tpu.memory_space<vmem>>, vector<1x16xf32>
    %6 = vector.shape_cast %5 : vector<1x16xf32> to vector<1x1x16xf32>
    %7 = vector.broadcast %4 : vector<2x8x1xf32> to vector<2x8x16xf32>
    %8 = vector.broadcast %6 : vector<1x1x16xf32> to vector<2x8x16xf32>
    %9 = arith.mulf %7, %8 : vector<2x8x16xf32>
    %c0_3 = arith.constant 0 : index
    %c0_4 = arith.constant 0 : index
    %c0_5 = arith.constant 0 : index
    %10 = vector.load %arg2[%c0_3, %c0_4, %c0_5] : memref<2x8x16xf32, #tpu.memory_space<vmem>>, vector<2x8x16xf32>
    tpu.vector_store %arg2[%c0_3, %c0_4, %c0_5], %9 {strides = array<i32>} : memref<2x8x16xf32, #tpu.memory_space<vmem>>, vector<2x8x16xf32>,
    return
  }
}

</mosaic_0001>

<llo_original>
// kernel: tpu_custom_call.1
$region0: #{tpu_custom_call.1}
  #allocation0 [shape = 'u32[]', space=smem, size = 0x4, offset = 0x4, fixed_abs, tag = 'smem constant byte address 0x4 - core index']
  #allocation1 [shape = 'u32[144,128]{1,0:T(1,128)}', space=vmem, size = 0x12000, scoped, tag = 'internal scratch']
  %s0 = inlined_call_operand.hbm [shape: f32[2,8], index: 0, kind: input, shape index: {}]
  %s1 = inlined_call_operand.vmem [shape: f32[1,16], index: 1, kind: input, shape index: {}]
  %s2 = inlined_call_operand.hbm [shape: f32[2,8,16], index: 2, kind: output, shape index: {}]
  %s3 = sld [smem:[#allocation0]]
  $region22: #{tpu_custom_call.1} parent=0
    _
  %s5 = ssub.s32 1, %s3
  %s6 = scalar_select 0, %s5, %s3
  $region1: #{tpu_custom_call.1} parent=0
    #allocation2 [shape = 'u8[1024]{0}', space=vmem, size = 0x400, scoped, tag = 'input window, operand 0, single buffered']
    #allocation3 [shape = 's32[1]{0}', space=sflag, size = 0x4, scoped, tag = 'scoped memory for tpu_custom_call.1']
    #allocation4 [shape = 's32[1]{0}', space=sflag, size = 0x4, scoped, tag = 'scoped memory for tpu_custom_call.1']
    #allocation5 [shape = 'u8[8192]{0}', space=vmem, size = 0x2000, scoped, tag = 'output window, operand 0, single buffered']
    %7 = vsyncpa [#allocation3], 0
    %8 = vsyncpa [#allocation4], 0
    // Predicated region
    $region2: #{tpu_custom_call.1} parent=1 // pred_check
      _
    $region3: #{tpu_custom_call.1} parent=1 // pred_check_branch
      %10 = sbr.rel (0) target = $region5
    $region4: #{tpu_custom_call.1} parent=1 // pred_region
      %s12 = ssub.s32 32, 32
      %13 = vsyncadd [#allocation3], %s12
      %s15 = sshll.u32 [#allocation2], 4
      %s16 = int_to_ptr.vmem [resolvable:$true] %s15
      %18 = dma.hbm_to_vmem [thread:$0]  %s0, 32, %s16, [#allocation3]
    $region5: #{tpu_custom_call.1} parent=1 // pred_fallthru
      _
    // Predicated region
    $region6: #{tpu_custom_call.1} parent=1 // pred_check
      _
    $region7: #{tpu_custom_call.1} parent=1 // pred_check_branch
      %20 = sbr.rel (0) target = $region9
    $region8: #{tpu_custom_call.1} parent=1 // pred_region
      _
    $region9: #{tpu_custom_call.1} parent=1 // pred_fallthru
      _
    // Predicated region
    $region10: #{tpu_custom_call.1} parent=1 // pred_check
      _
    $region11: #{tpu_custom_call.1} parent=1 // pred_check_branch
      %22 = sbr.rel (0) target = $region13
    $region12: #{tpu_custom_call.1} parent=1 // pred_region
      %23 = dma.done [#allocation3], 32
    $region13: #{tpu_custom_call.1} parent=1 // pred_fallthru
      _
    %v24 = vld [vmem:[#allocation2] sm:$0x3]
    %v25 = vadd.f32 %v24, 1e-10
    %v26 = vlog2.pop %v25
    %v27 = vmul.f32 %v26, 0.6931472
    %v28 = vlaneseq
    %v29 = vshrl.u32 %v28, 7
    %v30 = vsub.s32 0, %v29
    %v31 = vrot.slane %v27, %v30
    %33 = vbcast.lane.b32.xlu0 %v31, 256
    %v34 = vpop.permute.xlu0 %33
    %v35 = vlaneseq
    %v36 = vshrl.u32 %v35, 7
    %v37 = vsub.s32 1, %v36
    %v38 = vrot.slane %v27, %v37
    %40 = vbcast.lane.b32.xlu0 %v38, 256
    %v41 = vpop.permute.xlu0 %40
    %v42 = vld [vmem:[%s1] sm:$0x1]
    %v44 = vlaneseq
    %v45 = vshrl.u32 %v44, 7
    %v46 = vsub.s32 0, %v45
    %v47 = vrot.slane %v42, %v46
    %v49 = vmul.f32 %v34, %v47
    %v50 = vmul.f32 %v41, %v47
    %vm51 = vcmask 130048
    %52 = vst.msk [vmem:[#allocation5] sm:$0xff] %vm51, %v49
    %53 = vst.msk [vmem:[#allocation5 + $0x8] sm:$0xff] %vm51, %v50
    // Predicated region
    $region14: #{tpu_custom_call.1} parent=1 // pred_check
      _
    $region15: #{tpu_custom_call.1} parent=1 // pred_check_branch
      %55 = sbr.rel (0) target = $region17
    $region16: #{tpu_custom_call.1} parent=1 // pred_region
      %s57 = ssub.s32 256, 256
      %58 = vsyncadd [#allocation4], %s57
      %s59 = sshll.u32 [#allocation5], 4
      %s60 = int_to_ptr.vmem [resolvable:$true] %s59
      %65 = dma.vmem_to_hbm [thread:$0]  %s60, 256, %s2, [#allocation4], 128, 128, 8
    $region17: #{tpu_custom_call.1} parent=1 // pred_fallthru
      _
    // Predicated region
    $region18: #{tpu_custom_call.1} parent=1 // pred_check
      _
    $region19: #{tpu_custom_call.1} parent=1 // pred_check_branch
      %67 = sbr.rel (0) target = $region21
    $region20: #{tpu_custom_call.1} parent=1 // pred_region
      %68 = dma.done [#allocation4], 256
    $region21: #{tpu_custom_call.1} parent=1 // pred_fallthru
      _
    %69 = vsyncpa [#allocation3], 1
    %70 = vsyncpa [#allocation4], 1

</llo_original>
